<compile_context>
chip_gen: v7x
topology: tpu7x:2x2x1
jax: 0.10.0
libtpu: 0.0.40
codegen_flags: <defaults>
</compile_context>

<pallas_src>
import jax
import jax.numpy as jnp
from jax.experimental import pallas as pl
from jax.experimental.pallas import tpu as pltpu


_MAX_BATCH_TILE = 2048            # rows per grid step (upper cap)
_VMEM_TILE_BUDGET = 16 * 2 ** 20  # budget for double-buffered in/out tiles
_VMEM_LIMIT_BYTES = 32 * 2 ** 20  # safe on v5e/v6e/v7x, raises v5e's 16 MiB default
_MIN_PALLAS_ROWS = 64             # below this, plain-XLA fast path


def _round_up(x: int, m: int) -> int:
    return ((x + m - 1) // m) * m


def build_fused_params(emb_table, w_t, bias):
    """Pack module parameters into one block-diagonal weight (bias folded in).

    emb_table: [V, E]      nn.Embedding weight (V == static_variables per module)
    w_t:       [CV, CV*E]  nn.Linear weight, transposed for x @ W
    bias:      [CV*E]
    returns:   W_big [SV*V + CV + 1, SV*E + CV*E]
    """
    v, e = emb_table.shape
    sv = v  # nn.Embedding(static_variables, embedding_dim) -> vocab == slots
    cv, cout = w_t.shape
    static_block = jnp.kron(jnp.eye(sv, dtype=jnp.float32),
                            emb_table.astype(jnp.float32))           # [SV*V, SV*E]
    top = jnp.concatenate(
        [static_block, jnp.zeros((sv * v, cout), jnp.float32)], axis=1)
    mid = jnp.concatenate(
        [jnp.zeros((cv, sv * e), jnp.float32), w_t.astype(jnp.float32)], axis=1)
    bot = jnp.concatenate(
        [jnp.zeros((1, sv * e), jnp.float32),
         bias.astype(jnp.float32).reshape(1, cout)], axis=1)
    return jnp.concatenate([top, mid, bot], axis=0)                   # [K, OUT]


def _make_fused_kernel(sv: int, vocab: int, out_dtype):
    def kernel(static_ref, cont_ref, w_ref, out_ref):
        idx = static_ref[...]                       # [TB, SV] int32
        tb = idx.shape[0]
        # In-kernel one-hot from raw indices (hoisted iota, static SV unroll).
        lane = jax.lax.broadcasted_iota(jnp.int32, (tb, vocab), 1)
        pieces = []
        for s in range(sv):
            pieces.append((idx[:, s:s + 1] == lane).astype(jnp.float32))  # [TB, V]
        pieces.append(cont_ref[...])                                      # [TB, CV]
        pieces.append(jnp.ones((tb, 1), jnp.float32))                     # bias column
        x = jnp.concatenate(pieces, axis=1)         # [TB, SV*V + CV + 1]
        out_ref[...] = jnp.dot(
            x, w_ref[...], preferred_element_type=jnp.float32
        ).astype(out_dtype)
    return kernel


def current_variables_block(static_input, continuous_input, w_big, *,
                            static_variables: int, num_embeddings: int,
                            out_dtype=jnp.float32,
                            max_batch_tile: int = _MAX_BATCH_TILE,
                            vmem_tile_budget: int = _VMEM_TILE_BUDGET,
                            min_pallas_rows: int = _MIN_PALLAS_ROWS):
    """Forward pass of Current_variables_block (both branches present).

    static_input:     int   [bs, SV]   values in [0, num_embeddings)
    continuous_input: float [bs, CV]
    w_big:            packed params from build_fused_params
    returns:          [bs, SV*E + CV*E] in out_dtype
    """
    bs, sv = static_input.shape
    assert sv == static_variables
    cv = continuous_input.shape[1]
    k_dim, out_dim = w_big.shape
    assert k_dim == sv * num_embeddings + cv + 1

    static_input = static_input.astype(jnp.int32)
    continuous_input = continuous_input.astype(jnp.float32)

    # Small-batch fast path: pallas launch / padding dominate at tiny bs.
    if bs < min_pallas_rows:
        onehot = jax.nn.one_hot(
            static_input, num_embeddings, dtype=jnp.float32
        ).reshape(bs, sv * num_embeddings)
        x = jnp.concatenate(
            [onehot, continuous_input, jnp.ones((bs, 1), jnp.float32)], axis=1)
        return jnp.dot(x, w_big).astype(out_dtype)

    # Budget-driven batch tile: double-buffered input + output rows.
    out_bytes = jnp.dtype(out_dtype).itemsize
    in_row_bytes = (sv + cv) * 4
    per_row = 2 * (out_dim * out_bytes + in_row_bytes)
    tb = min(max_batch_tile, max(8, vmem_tile_budget // per_row))
    tb = max(8, (tb // 8) * 8)
    rows8 = max(8, _round_up(bs, 8))
    if rows8 <= tb:
        tb = rows8
        padded_bs = tb
    else:
        padded_bs = _round_up(bs, tb)

    if padded_bs != bs:
        pad = padded_bs - bs
        static_input = jnp.pad(static_input, ((0, pad), (0, 0)))
        continuous_input = jnp.pad(continuous_input, ((0, pad), (0, 0)))

    kernel = _make_fused_kernel(sv, num_embeddings, out_dtype)

    out = pl.pallas_call(
        kernel,
        out_shape=jax.ShapeDtypeStruct((padded_bs, out_dim), out_dtype),
        grid=(padded_bs // tb,),
        in_specs=[
            pl.BlockSpec((tb, sv), lambda i: (i, 0)),          # int32 indices (tiled)
            pl.BlockSpec((tb, cv), lambda i: (i, 0)),          # continuous (tiled)
            pl.BlockSpec((k_dim, out_dim), lambda i: (0, 0)),  # W_big: VMEM-resident
        ],
        out_specs=pl.BlockSpec((tb, out_dim), lambda i: (i, 0)),  # lane-dense slab
        compiler_params=pltpu.CompilerParams(
            dimension_semantics=("parallel",),                 # megacore on v7x
            vmem_limit_bytes=_VMEM_LIMIT_BYTES,
        ),
    )(static_input, continuous_input, w_big)

    return out[:bs]


def _reference(static_input, continuous_input, emb_table, w_t, bias):
    bs, sv = static_input.shape
    e = emb_table.shape[1]
    static_emb = emb_table[static_input].reshape(bs, sv * e)
    cont_emb = continuous_input @ w_t + bias
    return jnp.concatenate([static_emb, cont_emb], axis=-1)


if __name__ == "__main__":
    # Module config (small, consistent with the forward semantics)
    static_variables = 4        # also the embedding vocab size (per the module)
    continuous_variables = 4
    embedding_dim = 32
    bs = 256                    # large enough to exercise the Pallas path

    key = jax.random.PRNGKey(0)
    k_emb, k_w, k_b, k_si, k_ci = jax.random.split(key, 5)

    # Parameters (mimic nn.Embedding / nn.Linear shapes)
    emb_table = jax.random.normal(
        k_emb, (static_variables, embedding_dim), dtype=jnp.float32)
    lin_out = embedding_dim * continuous_variables
    bound = 1.0 / (continuous_variables ** 0.5)
    w_t = jax.random.uniform(
        k_w, (continuous_variables, lin_out), minval=-bound, maxval=bound,
        dtype=jnp.float32)
    bias = jax.random.uniform(
        k_b, (lin_out,), minval=-bound, maxval=bound, dtype=jnp.float32)

    # Inputs
    static_input = jax.random.randint(
        k_si, (bs, static_variables), 0, static_variables, dtype=jnp.int32)
    continuous_input = jax.random.normal(
        k_ci, (bs, continuous_variables), dtype=jnp.float32)

    # One-time parameter packing (module init time)
    w_big = build_fused_params(emb_table, w_t, bias)

    # Pallas path (max_batch_tile=128 forces a 2-step pipelined grid here).
    out = current_variables_block(
        static_input, continuous_input, w_big,
        static_variables=static_variables, num_embeddings=static_variables,
        max_batch_tile=128)
    out = jax.block_until_ready(out)

    ref = _reference(static_input, continuous_input, emb_table, w_t, bias)
    expected_cols = (static_variables + continuous_variables) * embedding_dim
    assert out.shape == (bs, expected_cols), out.shape
    assert jnp.allclose(out, ref, atol=1e-5, rtol=1e-5), \
        float(jnp.abs(out - ref).max())

    # Small-batch fast path (plain XLA) sanity check.
    out_small = current_variables_block(
        static_input[:2], continuous_input[:2], w_big,
        static_variables=static_variables, num_embeddings=static_variables)
    out_small = jax.block_until_ready(out_small)
    assert jnp.allclose(out_small, ref[:2], atol=1e-5, rtol=1e-5)

    print("KERNEL_OK")
</pallas_src>

<mosaic_0001>
module attributes {stable_mosaic.version = 11 : i64} {
  func.func @kernel(%arg0: i32, %arg1: memref<128x4xi32, #tpu.memory_space<vmem>>, %arg2: memref<128x4xf32, #tpu.memory_space<vmem>>, %arg3: memref<21x256xf32, #tpu.memory_space<vmem>>, %arg4: memref<128x256xf32, #tpu.memory_space<vmem>>) attributes {dimension_semantics = [#tpu.dimension_semantics<parallel>], iteration_bounds = array<i64: 2>, scalar_prefetch = 0 : i64, scratch_operands = 0 : i64, tpu.core_type = #tpu.core_type<tc>, window_params = [{transform_indices = @transform_0, window_bounds = array<i64: 128, 4>}, {transform_indices = @transform_1, window_bounds = array<i64: 128, 4>}, {pipeline_mode = #tpu.pipeline_mode<synchronous>, transform_indices = @transform_2, window_bounds = array<i64: 21, 256>}, {transform_indices = @transform_3, window_bounds = array<i64: 128, 256>}]} {
    %c0 = arith.constant 0 : index
    %c0_0 = arith.constant 0 : index
    %0 = vector.load %arg1[%c0, %c0_0] : memref<128x4xi32, #tpu.memory_space<vmem>>, vector<128x4xi32>
    %1 = tpu.iota {dimensions = array<i32: 1>} : vector<128x4xi32>
    %2 = vector.extract_strided_slice %0 {offsets = [0, 0], sizes = [128, 1], strides = [1, 1]} : vector<128x4xi32> to vector<128x1xi32>
    %3 = vector.broadcast %2 : vector<128x1xi32> to vector<128x4xi32>
    %4 = arith.cmpi eq, %3, %1 : vector<128x4xi32>
    %5 = arith.extui %4 : vector<128x4xi1> to vector<128x4xi32>
    %6 = arith.sitofp %5 : vector<128x4xi32> to vector<128x4xf32>
    %7 = vector.extract_strided_slice %0 {offsets = [0, 1], sizes = [128, 1], strides = [1, 1]} : vector<128x4xi32> to vector<128x1xi32>
    %8 = vector.broadcast %7 : vector<128x1xi32> to vector<128x4xi32>
    %9 = arith.cmpi eq, %8, %1 : vector<128x4xi32>
    %10 = arith.extui %9 : vector<128x4xi1> to vector<128x4xi32>
    %11 = arith.sitofp %10 : vector<128x4xi32> to vector<128x4xf32>
    %12 = vector.extract_strided_slice %0 {offsets = [0, 2], sizes = [128, 1], strides = [1, 1]} : vector<128x4xi32> to vector<128x1xi32>
    %13 = vector.broadcast %12 : vector<128x1xi32> to vector<128x4xi32>
    %14 = arith.cmpi eq, %13, %1 : vector<128x4xi32>
    %15 = arith.extui %14 : vector<128x4xi1> to vector<128x4xi32>
    %16 = arith.sitofp %15 : vector<128x4xi32> to vector<128x4xf32>
    %17 = vector.extract_strided_slice %0 {offsets = [0, 3], sizes = [128, 1], strides = [1, 1]} : vector<128x4xi32> to vector<128x1xi32>
    %18 = vector.broadcast %17 : vector<128x1xi32> to vector<128x4xi32>
    %19 = arith.cmpi eq, %18, %1 : vector<128x4xi32>
    %20 = arith.extui %19 : vector<128x4xi1> to vector<128x4xi32>
    %21 = arith.sitofp %20 : vector<128x4xi32> to vector<128x4xf32>
    %c0_1 = arith.constant 0 : index
    %c0_2 = arith.constant 0 : index
    %22 = vector.load %arg2[%c0_1, %c0_2] : memref<128x4xf32, #tpu.memory_space<vmem>>, vector<128x4xf32>
    %cst = arith.constant 1.000000e+00 : f32
    %23 = vector.broadcast %cst : f32 to vector<128x1xf32>
    %24 = tpu.concatenate %6, %11, %16, %21, %22, %23 in 1 : vector<128x4xf32>, vector<128x4xf32>, vector<128x4xf32>, vector<128x4xf32>, vector<128x4xf32>, vector<128x1xf32> -> vector<128x21xf32>
    %c0_3 = arith.constant 0 : index
    %c0_4 = arith.constant 0 : index
    %25 = vector.load %arg3[%c0_3, %c0_4] : memref<21x256xf32, #tpu.memory_space<vmem>>, vector<21x256xf32>
    %cst_5 = arith.constant dense<0.000000e+00> : vector<128x256xf32>
    %26 = tpu.matmul %24, %25, %cst_5 {dimension_numbers = #tpu.dot_dimension_numbers<[1], [0], [0], [1], [0, 0, 1, 1], [], []>} : vector<128x21xf32>, vector<21x256xf32>, vector<128x256xf32> -> vector<128x256xf32>
    %c0_6 = arith.constant 0 : index
    %c0_7 = arith.constant 0 : index
    %27 = vector.load %arg4[%c0_6, %c0_7] : memref<128x256xf32, #tpu.memory_space<vmem>>, vector<128x256xf32>
    tpu.vector_store %arg4[%c0_6, %c0_7], %26 {strides = array<i32>} : memref<128x256xf32, #tpu.memory_space<vmem>>, vector<128x256xf32>,
    return
  }
  func.func @transform_0(%arg0: i32) -> (i32, i32) {
    %c0_i32 = arith.constant 0 : i32
    %c0_i32_0 = arith.constant 0 : i32
    return %arg0, %c0_i32 : i32, i32
  }
  func.func @transform_1(%arg0: i32) -> (i32, i32) {
    %c0_i32 = arith.constant 0 : i32
    %c0_i32_0 = arith.constant 0 : i32
    return %arg0, %c0_i32 : i32, i32
  }
  func.func @transform_2(%arg0: i32) -> (i32, i32) {
    %c0_i32 = arith.constant 0 : i32
    %c0_i32_0 = arith.constant 0 : i32
    %c0_i32_1 = arith.constant 0 : i32
    return %c0_i32, %c0_i32_0 : i32, i32
  }
  func.func @transform_3(%arg0: i32) -> (i32, i32) {
    %c0_i32 = arith.constant 0 : i32
    %c0_i32_0 = arith.constant 0 : i32
    return %arg0, %c0_i32 : i32, i32
  }
}

</mosaic_0001>

<llo_original>
// kernel: tpu_custom_call.1
$region0: #{tpu_custom_call.1}
  #allocation0 [shape = 'u32[]', space=smem, size = 0x4, offset = 0x4, fixed_abs, tag = 'smem constant byte address 0x4 - core index']
  #allocation1 [shape = 'u32[144,128]{1,0:T(1,128)}', space=vmem, size = 0x12000, scoped, tag = 'internal scratch']
  %s0 = inlined_call_operand.vmem [shape: s32[256,4], index: 0, kind: input, shape index: {}]
  %s1 = inlined_call_operand.vmem [shape: f32[256,4], index: 1, kind: input, shape index: {}]
  %s2 = inlined_call_operand.vmem [shape: f32[21,256], index: 2, kind: input, shape index: {}]
  %s3 = inlined_call_operand.hbm [shape: f32[256,256], index: 3, kind: output, shape index: {}]
  %s4 = sld [smem:[#allocation0]]
  $region45: #{tpu_custom_call.1} parent=0
    _
  %s6 = ssub.s32 1, %s4
  %s7 = scalar_select 0, %s6, %s4
  $region1: #{tpu_custom_call.1} parent=0
    #allocation2 [shape = 'u8[262144]{0}', space=vmem, size = 0x40000, scoped, tag = 'output window, operand 0']
    #allocation3 [shape = 's32[2]{0}', space=sflag, size = 0x8, scoped, tag = 'scoped memory for tpu_custom_call.1']
    %8 = vsyncpa [#allocation3], 0
    %s9 = scalar_lea.sflag [#allocation3], 1
    %10 = vsyncpa %s9, 0
    loop: start=0, step=1, limit=4
    $region2: #{tpu_custom_call.1} parent=1 // loop_pre_header
      _
    $region3: #{tpu_custom_call.1} parent=1 // loop_header
      %s12 = sphi 0, %s16
      %p13 = scmp.ge.s32.totalorder %s12, 4
      %s22 = sphi 0, %s24
      %s25 = sphi 0, %s22
      %s26 = sphi 0, %s25
      %s42 = sphi 0, %s26
      %s48 = sphi 0, %s50
      %s51 = sphi 0, %s48
      %s52 = sphi 0, %s51
      %s68 = sphi 0, %s52
      %s72 = sphi 0, %s72
      %s74 = sphi 0, %s72
      %s75 = sphi 0, %s74
      %s89 = sphi 0, %s75
      %s95 = sphi 0, %s97
      %s98 = sphi 0, %s95
      %s99 = sphi 0, %s98
      %s115 = sphi 0, %s99
    $region4: #{tpu_custom_call.1} parent=1 // loop_header_branch
      %15 = sbr.rel (%p13) target = $region8
    $region5: #{tpu_custom_call.1} parent=1 // loop_body
      %s17 = ssub.s32 %s12, 1
      %s18 = ssub.s32 %s12, 2
      %s19 = sadd.s32 %s12, 1
      %s20 = ssub.s32 %s12, %s19
      %p21 = scmp.eq.s32.totalorder %s20, 0
      %s23 = sadd.s32 %s22, 1
      %s24 = scalar_select %p21, %s22, %s23
      %p27 = pneg %p21
      %p28 = scmp.eq.s32.totalorder %s12, 1
      %p29 = por %p27, %p28
      %p30 = scmp.ne.s32.totalorder %s22, %s25
      %p31 = scmp.eq.s32.totalorder %s12, 0
      %p32 = por %p30, %p31
      %p33 = scmp.ne.s32.totalorder %s22, %s25
      %p34 = scmp.eq.s32.totalorder %s17, 1
      %p35 = por %p33, %p34
      %p36 = scmp.ne.s32.totalorder %s25, %s26
      %p37 = scmp.eq.s32.totalorder %s17, 0
      %p38 = por %p36, %p37
      %p39 = scmp.ne.s32.totalorder %s25, %s26
      %p40 = scmp.eq.s32.totalorder %s18, 1
      %p41 = por %p39, %p40
      %p43 = scmp.ne.s32.totalorder %s26, %s42
      %p44 = scmp.eq.s32.totalorder %s18, 0
      %p45 = por %p43, %p44
      %s46 = ssub.s32 %s12, %s19
      %p47 = scmp.eq.s32.totalorder %s46, 0
      %s49 = sadd.s32 %s48, 1
      %s50 = scalar_select %p47, %s48, %s49
      %p53 = pneg %p47
      %p54 = scmp.eq.s32.totalorder %s12, 1
      %p55 = por %p53, %p54
      %p56 = scmp.ne.s32.totalorder %s48, %s51
      %p57 = scmp.eq.s32.totalorder %s12, 0
      %p58 = por %p56, %p57
      %p59 = scmp.ne.s32.totalorder %s48, %s51
      %p60 = scmp.eq.s32.totalorder %s17, 1
      %p61 = por %p59, %p60
      %p62 = scmp.ne.s32.totalorder %s51, %s52
      %p63 = scmp.eq.s32.totalorder %s17, 0
      %p64 = por %p62, %p63
      %p65 = scmp.ne.s32.totalorder %s51, %s52
      %p66 = scmp.eq.s32.totalorder %s18, 1
      %p67 = por %p65, %p66
      %p69 = scmp.ne.s32.totalorder %s52, %s68
      %p70 = scmp.eq.s32.totalorder %s18, 0
      %p71 = por %p69, %p70
      %s73 = sadd.s32 %s72, 1
      %p76 = scmp.eq.s32.totalorder %s12, 1
      %p77 = scmp.ne.s32.totalorder %s72, %s74
      %p78 = scmp.eq.s32.totalorder %s12, 0
      %p79 = por %p77, %p78
      %p80 = scmp.ne.s32.totalorder %s72, %s74
      %p81 = scmp.eq.s32.totalorder %s17, 1
      %p82 = por %p80, %p81
      %p83 = scmp.ne.s32.totalorder %s74, %s75
      %p84 = scmp.eq.s32.totalorder %s17, 0
      %p85 = por %p83, %p84
      %p86 = scmp.ne.s32.totalorder %s74, %s75
      %p87 = scmp.eq.s32.totalorder %s18, 1
      %p88 = por %p86, %p87
      %p90 = scmp.ne.s32.totalorder %s75, %s89
      %p91 = scmp.eq.s32.totalorder %s18, 0
      %p92 = por %p90, %p91
      %s93 = ssub.s32 %s12, %s19
      %p94 = scmp.eq.s32.totalorder %s93, 0
      %s96 = sadd.s32 %s95, 1
      %s97 = scalar_select %p94, %s95, %s96
      %p100 = pneg %p94
      %p101 = scmp.eq.s32.totalorder %s12, 1
      %p102 = por %p100, %p101
      %p103 = scmp.ne.s32.totalorder %s95, %s98
      %p104 = scmp.eq.s32.totalorder %s12, 0
      %p105 = por %p103, %p104
      %p106 = scmp.ne.s32.totalorder %s95, %s98
      %p107 = scmp.eq.s32.totalorder %s17, 1
      %p108 = por %p106, %p107
      %p109 = scmp.ne.s32.totalorder %s98, %s99
      %p110 = scmp.eq.s32.totalorder %s17, 0
      %p111 = por %p109, %p110
      %p112 = scmp.ne.s32.totalorder %s98, %s99
      %p113 = scmp.eq.s32.totalorder %s18, 1
      %p114 = por %p112, %p113
      %p116 = scmp.ne.s32.totalorder %s99, %s115
      %p117 = scmp.eq.s32.totalorder %s18, 0
      %p118 = por %p116, %p117
      %p119 = scmp.le.s32.totalorder 1, %s12
      %p120 = scmp.lt.s32.totalorder %s12, 3
      %p121 = pnand %p119, %p120
      %p122 = pneg %p121
      // Predicated region
      $region9: #{tpu_custom_call.1} parent=5 // pred_check
        _
      $region10: #{tpu_custom_call.1} parent=5 // pred_check_branch
        %124 = sbr.rel (%p121) target = $region12
      $region11: #{tpu_custom_call.1} parent=5 // pred_region
        %s125 = ssub.s32 %s12, 1
        // Predicated region
        $region13: #{tpu_custom_call.1} parent=11 // pred_check
          %p126 = pneg %p85
        $region14: #{tpu_custom_call.1} parent=11 // pred_check_branch
          %128 = sbr.rel (%p126) target = $region16
        $region15: #{tpu_custom_call.1} parent=11 // pred_region
          _
        $region16: #{tpu_custom_call.1} parent=11 // pred_fallthru
          _
      $region12: #{tpu_custom_call.1} parent=5 // pred_fallthru
        _
      %p129 = scmp.lt.s32.totalorder %s12, 2
      // Predicated region
      $region17: #{tpu_custom_call.1} parent=5 // pred_check
        %p130 = pneg %p129
      $region18: #{tpu_custom_call.1} parent=5 // pred_check_branch
        %132 = sbr.rel (%p130) target = $region20
      $region19: #{tpu_custom_call.1} parent=5 // pred_region
        // Predicated region
        $region21: #{tpu_custom_call.1} parent=19 // pred_check
          %p133 = pneg %p32
        $region22: #{tpu_custom_call.1} parent=19 // pred_check_branch
          %135 = sbr.rel (%p133) target = $region24
        $region23: #{tpu_custom_call.1} parent=19 // pred_region
          %s136 = smul.u32 16, %s12
          %p137 = scmp.lt.s32.totalorder %s136, 31
          %s138 = scalar_select %p137, %s136, 31
          %s139 = smul.addr %s138, 8
          %s140 = scalar_lea.vmem %s0, %s139
          %s141 = smul.u32 16, %s12
        $region24: #{tpu_custom_call.1} parent=19 // pred_fallthru
          _
        // Predicated region
        $region25: #{tpu_custom_call.1} parent=19 // pred_check
          %p142 = pneg %p58
        $region26: #{tpu_custom_call.1} parent=19 // pred_check_branch
          %144 = sbr.rel (%p142) target = $region28
        $region27: #{tpu_custom_call.1} parent=19 // pred_region
          %s145 = smul.u32 16, %s12
          %p146 = scmp.lt.s32.totalorder %s145, 31
          %s147 = scalar_select %p146, %s145, 31
          %s148 = smul.addr %s147, 8
          %s149 = scalar_lea.vmem %s1, %s148
          %s150 = smul.u32 16, %s12
        $region28: #{tpu_custom_call.1} parent=19 // pred_fallthru
          _
      $region20: #{tpu_custom_call.1} parent=5 // pred_fallthru
        _
      %p151 = scmp.le.s32.totalorder 1, %s12
      %p152 = scmp.lt.s32.totalorder %s12, 3
      %p153 = pnand %p151, %p152
      %p154 = pneg %p153
      // Predicated region
      $region29: #{tpu_custom_call.1} parent=5 // pred_check
        _
      $region30: #{tpu_custom_call.1} parent=5 // pred_check_branch
        %156 = sbr.rel (%p153) target = $region32
      $region31: #{tpu_custom_call.1} parent=5 // pred_region
        %s157 = ssub.s32 %s12, 1
        %s158 = smul.u32 16, %s17
        %p159 = scmp.lt.s32.totalorder %s158, 31
        %s160 = scalar_select %p159, %s158, 31
        %s161 = smul.addr %s160, 8
        %s162 = scalar_lea.vmem %s0, %s161
        %p163 = pneg %p38
        %p164 = pneg %p35
        %s165 = smul.u32 16, %s17
        %p166 = scmp.lt.s32.totalorder %s165, 31
        %s167 = scalar_select %p166, %s165, 31
        %s168 = smul.addr %s167, 8
        %s169 = scalar_lea.vmem %s1, %s168
        %p170 = pneg %p64
        %p171 = pneg %p61
        %p172 = pneg %p85
        %p173 = pneg %p82
        %p174 = pneg %p111
        %p175 = pneg %p108
        %s176 = sand.u32 %s98, 1
        %s177 = scalar_lea.sflag [#allocation3], %s176
        %s178 = sand.u32 %s98, 1
        %s179 = smul.addr %s178, 256
        %s180 = scalar_lea.vmem [#allocation2], %s179
        %s181 = smul.u32 16, %s17
        %p182 = scmp.lt.s32.totalorder %s181, 31
        %s183 = scalar_select %p182, %s181, 31
        %s184 = smul.addr %s183, 8
        %s185 = scalar_lea.vmem %s0, %s184
        %s186 = smul.u32 16, %s17
        %s187 = smul.u32 16, %s17
        %p188 = scmp.lt.s32.totalorder %s187, 31
        %s189 = scalar_select %p188, %s187, 31
        %s190 = smul.addr %s189, 8
        %s191 = scalar_lea.vmem %s1, %s190
        %s192 = smul.u32 16, %s17
        %s193 = smul.u32 16, %s17
        %v194 = vld [vmem:[%s185] sm:$0xff]
        %v195 = vld [vmem:[%s185 + $0x8] sm:$0xff]
        %v196 = vld [vmem:[%s185 + $0x10] sm:$0xff]
        %v197 = vld [vmem:[%s185 + $0x18] sm:$0xff]
        %v198 = vld [vmem:[%s185 + $0x20] sm:$0xff]
        %v199 = vld [vmem:[%s185 + $0x28] sm:$0xff]
        %v200 = vld [vmem:[%s185 + $0x30] sm:$0xff]
        %v201 = vld [vmem:[%s185 + $0x38] sm:$0xff]
        %v202 = vld [vmem:[%s185 + $0x40] sm:$0xff]
        %v203 = vld [vmem:[%s185 + $0x48] sm:$0xff]
        %v204 = vld [vmem:[%s185 + $0x50] sm:$0xff]
        %v205 = vld [vmem:[%s185 + $0x58] sm:$0xff]
        %v206 = vld [vmem:[%s185 + $0x60] sm:$0xff]
        %v207 = vld [vmem:[%s185 + $0x68] sm:$0xff]
        %v208 = vld [vmem:[%s185 + $0x70] sm:$0xff]
        %v209 = vld [vmem:[%s185 + $0x78] sm:$0xff]
        %v210 = vlaneseq
        %v211 = vand.u32 %v210, 127
        %212 = vset.pattern.permute.xlu0 0
        %213 = vperm.xlu0 %212, %v194
        %v214 = vpop.permute.xlu0 %213
        %215 = vset.pattern.permute.xlu0 0
        %216 = vperm.xlu0 %215, %v195
        %v217 = vpop.permute.xlu0 %216
        %218 = vset.pattern.permute.xlu0 0
        %219 = vperm.xlu0 %218, %v196
        %v220 = vpop.permute.xlu0 %219
        %221 = vset.pattern.permute.xlu0 0
        %222 = vperm.xlu0 %221, %v197
        %v223 = vpop.permute.xlu0 %222
        %224 = vset.pattern.permute.xlu0 0
        %225 = vperm.xlu0 %224, %v198
        %v226 = vpop.permute.xlu0 %225
        %227 = vset.pattern.permute.xlu0 0
        %228 = vperm.xlu0 %227, %v199
        %v229 = vpop.permute.xlu0 %228
        %230 = vset.pattern.permute.xlu0 0
        %231 = vperm.xlu0 %230, %v200
        %v232 = vpop.permute.xlu0 %231
        %233 = vset.pattern.permute.xlu0 0
        %234 = vperm.xlu0 %233, %v201
        %v235 = vpop.permute.xlu0 %234
        %236 = vset.pattern.permute.xlu0 0
        %237 = vperm.xlu0 %236, %v202
        %v238 = vpop.permute.xlu0 %237
        %239 = vset.pattern.permute.xlu0 0
        %240 = vperm.xlu0 %239, %v203
        %v241 = vpop.permute.xlu0 %240
        %242 = vset.pattern.permute.xlu0 0
        %243 = vperm.xlu0 %242, %v204
        %v244 = vpop.permute.xlu0 %243
        %245 = vset.pattern.permute.xlu0 0
        %246 = vperm.xlu0 %245, %v205
        %v247 = vpop.permute.xlu0 %246
        %248 = vset.pattern.permute.xlu0 0
        %249 = vperm.xlu0 %248, %v206
        %v250 = vpop.permute.xlu0 %249
        %251 = vset.pattern.permute.xlu0 0
        %252 = vperm.xlu0 %251, %v207
        %v253 = vpop.permute.xlu0 %252
        %254 = vset.pattern.permute.xlu0 0
        %255 = vperm.xlu0 %254, %v208
        %v256 = vpop.permute.xlu0 %255
        %257 = vset.pattern.permute.xlu0 0
        %258 = vperm.xlu0 %257, %v209
        %v259 = vpop.permute.xlu0 %258
        %vm260 = vcmp.eq.s32.totalorder %v214, %v211
        %vm261 = vcmp.eq.s32.totalorder %v217, %v211
        %vm262 = vcmp.eq.s32.totalorder %v220, %v211
        %vm263 = vcmp.eq.s32.totalorder %v223, %v211
        %vm264 = vcmp.eq.s32.totalorder %v226, %v211
        %vm265 = vcmp.eq.s32.totalorder %v229, %v211
        %vm266 = vcmp.eq.s32.totalorder %v232, %v211
        %vm267 = vcmp.eq.s32.totalorder %v235, %v211
        %vm268 = vcmp.eq.s32.totalorder %v238, %v211
        %vm269 = vcmp.eq.s32.totalorder %v241, %v211
        %vm270 = vcmp.eq.s32.totalorder %v244, %v211
        %vm271 = vcmp.eq.s32.totalorder %v247, %v211
        %vm272 = vcmp.eq.s32.totalorder %v250, %v211
        %vm273 = vcmp.eq.s32.totalorder %v253, %v211
        %vm274 = vcmp.eq.s32.totalorder %v256, %v211
        %vm275 = vcmp.eq.s32.totalorder %v259, %v211
        %v276 = vsel %vm260, 1, 0
        %v277 = vsel %vm261, 1, 0
        %v278 = vsel %vm262, 1, 0
        %v279 = vsel %vm263, 1, 0
        %v280 = vsel %vm264, 1, 0
        %v281 = vsel %vm265, 1, 0
        %v282 = vsel %vm266, 1, 0
        %v283 = vsel %vm267, 1, 0
        %v284 = vsel %vm268, 1, 0
        %v285 = vsel %vm269, 1, 0
        %v286 = vsel %vm270, 1, 0
        %v287 = vsel %vm271, 1, 0
        %v288 = vsel %vm272, 1, 0
        %v289 = vsel %vm273, 1, 0
        %v290 = vsel %vm274, 1, 0
        %v291 = vsel %vm275, 1, 0
        %v292 = vcvt.s32.f32 %v276
        %v293 = vcvt.s32.f32 %v277
        %v294 = vcvt.s32.f32 %v278
        %v295 = vcvt.s32.f32 %v279
        %v296 = vcvt.s32.f32 %v280
        %v297 = vcvt.s32.f32 %v281
        %v298 = vcvt.s32.f32 %v282
        %v299 = vcvt.s32.f32 %v283
        %v300 = vcvt.s32.f32 %v284
        %v301 = vcvt.s32.f32 %v285
        %v302 = vcvt.s32.f32 %v286
        %v303 = vcvt.s32.f32 %v287
        %v304 = vcvt.s32.f32 %v288
        %v305 = vcvt.s32.f32 %v289
        %v306 = vcvt.s32.f32 %v290
        %v307 = vcvt.s32.f32 %v291
        %308 = vset.pattern.permute.xlu0 1
        %309 = vperm.xlu0 %308, %v194
        %v310 = vpop.permute.xlu0 %309
        %311 = vset.pattern.permute.xlu0 1
        %312 = vperm.xlu0 %311, %v195
        %v313 = vpop.permute.xlu0 %312
        %314 = vset.pattern.permute.xlu0 1
        %315 = vperm.xlu0 %314, %v196
        %v316 = vpop.permute.xlu0 %315
        %317 = vset.pattern.permute.xlu0 1
        %318 = vperm.xlu0 %317, %v197
        %v319 = vpop.permute.xlu0 %318
        %320 = vset.pattern.permute.xlu0 1
        %321 = vperm.xlu0 %320, %v198
        %v322 = vpop.permute.xlu0 %321
        %323 = vset.pattern.permute.xlu0 1
        %324 = vperm.xlu0 %323, %v199
        %v325 = vpop.permute.xlu0 %324
        %326 = vset.pattern.permute.xlu0 1
        %327 = vperm.xlu0 %326, %v200
        %v328 = vpop.permute.xlu0 %327
        %329 = vset.pattern.permute.xlu0 1
        %330 = vperm.xlu0 %329, %v201
        %v331 = vpop.permute.xlu0 %330
        %332 = vset.pattern.permute.xlu0 1
        %333 = vperm.xlu0 %332, %v202
        %v334 = vpop.permute.xlu0 %333
        %335 = vset.pattern.permute.xlu0 1
        %336 = vperm.xlu0 %335, %v203
        %v337 = vpop.permute.xlu0 %336
        %338 = vset.pattern.permute.xlu0 1
        %339 = vperm.xlu0 %338, %v204
        %v340 = vpop.permute.xlu0 %339
        %341 = vset.pattern.permute.xlu0 1
        %342 = vperm.xlu0 %341, %v205
        %v343 = vpop.permute.xlu0 %342
        %344 = vset.pattern.permute.xlu0 1
        %345 = vperm.xlu0 %344, %v206
        %v346 = vpop.permute.xlu0 %345
        %347 = vset.pattern.permute.xlu0 1
        %348 = vperm.xlu0 %347, %v207
        %v349 = vpop.permute.xlu0 %348
        %350 = vset.pattern.permute.xlu0 1
        %351 = vperm.xlu0 %350, %v208
        %v352 = vpop.permute.xlu0 %351
        %353 = vset.pattern.permute.xlu0 1
        %354 = vperm.xlu0 %353, %v209
        %v355 = vpop.permute.xlu0 %354
        %vm356 = vcmp.eq.s32.totalorder %v310, %v211
        %vm357 = vcmp.eq.s32.totalorder %v313, %v211
        %vm358 = vcmp.eq.s32.totalorder %v316, %v211
        %vm359 = vcmp.eq.s32.totalorder %v319, %v211
        %vm360 = vcmp.eq.s32.totalorder %v322, %v211
        %vm361 = vcmp.eq.s32.totalorder %v325, %v211
        %vm362 = vcmp.eq.s32.totalorder %v328, %v211
        %vm363 = vcmp.eq.s32.totalorder %v331, %v211
        %vm364 = vcmp.eq.s32.totalorder %v334, %v211
        %vm365 = vcmp.eq.s32.totalorder %v337, %v211
        %vm366 = vcmp.eq.s32.totalorder %v340, %v211
        %vm367 = vcmp.eq.s32.totalorder %v343, %v211
        %vm368 = vcmp.eq.s32.totalorder %v346, %v211
        %vm369 = vcmp.eq.s32.totalorder %v349, %v211
        %vm370 = vcmp.eq.s32.totalorder %v352, %v211
        %vm371 = vcmp.eq.s32.totalorder %v355, %v211
        %v372 = vsel %vm356, 1, 0
        %v373 = vsel %vm357, 1, 0
        %v374 = vsel %vm358, 1, 0
        %v375 = vsel %vm359, 1, 0
        %v376 = vsel %vm360, 1, 0
        %v377 = vsel %vm361, 1, 0
        %v378 = vsel %vm362, 1, 0
        %v379 = vsel %vm363, 1, 0
        %v380 = vsel %vm364, 1, 0
        %v381 = vsel %vm365, 1, 0
        %v382 = vsel %vm366, 1, 0
        %v383 = vsel %vm367, 1, 0
        %v384 = vsel %vm368, 1, 0
        %v385 = vsel %vm369, 1, 0
        %v386 = vsel %vm370, 1, 0
        %v387 = vsel %vm371, 1, 0
        %v388 = vcvt.s32.f32 %v372
        %v389 = vcvt.s32.f32 %v373
        %v390 = vcvt.s32.f32 %v374
        %v391 = vcvt.s32.f32 %v375
        %v392 = vcvt.s32.f32 %v376
        %v393 = vcvt.s32.f32 %v377
        %v394 = vcvt.s32.f32 %v378
        %v395 = vcvt.s32.f32 %v379
        %v396 = vcvt.s32.f32 %v380
        %v397 = vcvt.s32.f32 %v381
        %v398 = vcvt.s32.f32 %v382
        %v399 = vcvt.s32.f32 %v383
        %v400 = vcvt.s32.f32 %v384
        %v401 = vcvt.s32.f32 %v385
        %v402 = vcvt.s32.f32 %v386
        %v403 = vcvt.s32.f32 %v387
        %404 = vset.pattern.permute.xlu0 2
        %405 = vperm.xlu0 %404, %v194
        %v406 = vpop.permute.xlu0 %405
        %407 = vset.pattern.permute.xlu0 2
        %408 = vperm.xlu0 %407, %v195
        %v409 = vpop.permute.xlu0 %408
        %410 = vset.pattern.permute.xlu0 2
        %411 = vperm.xlu0 %410, %v196
        %v412 = vpop.permute.xlu0 %411
        %413 = vset.pattern.permute.xlu0 2
        %414 = vperm.xlu0 %413, %v197
        %v415 = vpop.permute.xlu0 %414
        %416 = vset.pattern.permute.xlu0 2
        %417 = vperm.xlu0 %416, %v198
        %v418 = vpop.permute.xlu0 %417
        %419 = vset.pattern.permute.xlu0 2
        %420 = vperm.xlu0 %419, %v199
        %v421 = vpop.permute.xlu0 %420
        %422 = vset.pattern.permute.xlu0 2
        %423 = vperm.xlu0 %422, %v200
        %v424 = vpop.permute.xlu0 %423
        %425 = vset.pattern.permute.xlu0 2
        %426 = vperm.xlu0 %425, %v201
        %v427 = vpop.permute.xlu0 %426
        %428 = vset.pattern.permute.xlu0 2
        %429 = vperm.xlu0 %428, %v202
        %v430 = vpop.permute.xlu0 %429
        %431 = vset.pattern.permute.xlu0 2
        %432 = vperm.xlu0 %431, %v203
        %v433 = vpop.permute.xlu0 %432
        %434 = vset.pattern.permute.xlu0 2
        %435 = vperm.xlu0 %434, %v204
        %v436 = vpop.permute.xlu0 %435
        %437 = vset.pattern.permute.xlu0 2
        %438 = vperm.xlu0 %437, %v205
        %v439 = vpop.permute.xlu0 %438
        %440 = vset.pattern.permute.xlu0 2
        %441 = vperm.xlu0 %440, %v206
        %v442 = vpop.permute.xlu0 %441
        %443 = vset.pattern.permute.xlu0 2
        %444 = vperm.xlu0 %443, %v207
        %v445 = vpop.permute.xlu0 %444
        %446 = vset.pattern.permute.xlu0 2
        %447 = vperm.xlu0 %446, %v208
        %v448 = vpop.permute.xlu0 %447
        %449 = vset.pattern.permute.xlu0 2
        %450 = vperm.xlu0 %449, %v209
        %v451 = vpop.permute.xlu0 %450
        %vm452 = vcmp.eq.s32.totalorder %v406, %v211
        %vm453 = vcmp.eq.s32.totalorder %v409, %v211
        %vm454 = vcmp.eq.s32.totalorder %v412, %v211
        %vm455 = vcmp.eq.s32.totalorder %v415, %v211
        %vm456 = vcmp.eq.s32.totalorder %v418, %v211
        %vm457 = vcmp.eq.s32.totalorder %v421, %v211
        %vm458 = vcmp.eq.s32.totalorder %v424, %v211
        %vm459 = vcmp.eq.s32.totalorder %v427, %v211
        %vm460 = vcmp.eq.s32.totalorder %v430, %v211
        %vm461 = vcmp.eq.s32.totalorder %v433, %v211
        %vm462 = vcmp.eq.s32.totalorder %v436, %v211
        %vm463 = vcmp.eq.s32.totalorder %v439, %v211
        %vm464 = vcmp.eq.s32.totalorder %v442, %v211
        %vm465 = vcmp.eq.s32.totalorder %v445, %v211
        %vm466 = vcmp.eq.s32.totalorder %v448, %v211
        %vm467 = vcmp.eq.s32.totalorder %v451, %v211
        %v468 = vsel %vm452, 1, 0
        %v469 = vsel %vm453, 1, 0
        %v470 = vsel %vm454, 1, 0
        %v471 = vsel %vm455, 1, 0
        %v472 = vsel %vm456, 1, 0
        %v473 = vsel %vm457, 1, 0
        %v474 = vsel %vm458, 1, 0
        %v475 = vsel %vm459, 1, 0
        %v476 = vsel %vm460, 1, 0
        %v477 = vsel %vm461, 1, 0
        %v478 = vsel %vm462, 1, 0
        %v479 = vsel %vm463, 1, 0
        %v480 = vsel %vm464, 1, 0
        %v481 = vsel %vm465, 1, 0
        %v482 = vsel %vm466, 1, 0
        %v483 = vsel %vm467, 1, 0
        %v484 = vcvt.s32.f32 %v468
        %v485 = vcvt.s32.f32 %v469
        %v486 = vcvt.s32.f32 %v470
        %v487 = vcvt.s32.f32 %v471
        %v488 = vcvt.s32.f32 %v472
        %v489 = vcvt.s32.f32 %v473
        %v490 = vcvt.s32.f32 %v474
        %v491 = vcvt.s32.f32 %v475
        %v492 = vcvt.s32.f32 %v476
        %v493 = vcvt.s32.f32 %v477
        %v494 = vcvt.s32.f32 %v478
        %v495 = vcvt.s32.f32 %v479
        %v496 = vcvt.s32.f32 %v480
        %v497 = vcvt.s32.f32 %v481
        %v498 = vcvt.s32.f32 %v482
        %v499 = vcvt.s32.f32 %v483
        %500 = vset.pattern.permute.xlu0 3
        %501 = vperm.xlu0 %500, %v194
        %v502 = vpop.permute.xlu0 %501
        %503 = vset.pattern.permute.xlu0 3
        %504 = vperm.xlu0 %503, %v195
        %v505 = vpop.permute.xlu0 %504
        %506 = vset.pattern.permute.xlu0 3
        %507 = vperm.xlu0 %506, %v196
        %v508 = vpop.permute.xlu0 %507
        %509 = vset.pattern.permute.xlu0 3
        %510 = vperm.xlu0 %509, %v197
        %v511 = vpop.permute.xlu0 %510
        %512 = vset.pattern.permute.xlu0 3
        %513 = vperm.xlu0 %512, %v198
        %v514 = vpop.permute.xlu0 %513
        %515 = vset.pattern.permute.xlu0 3
        %516 = vperm.xlu0 %515, %v199
        %v517 = vpop.permute.xlu0 %516
        %518 = vset.pattern.permute.xlu0 3
        %519 = vperm.xlu0 %518, %v200
        %v520 = vpop.permute.xlu0 %519
        %521 = vset.pattern.permute.xlu0 3
        %522 = vperm.xlu0 %521, %v201
        %v523 = vpop.permute.xlu0 %522
        %524 = vset.pattern.permute.xlu0 3
        %525 = vperm.xlu0 %524, %v202
        %v526 = vpop.permute.xlu0 %525
        %527 = vset.pattern.permute.xlu0 3
        %528 = vperm.xlu0 %527, %v203
        %v529 = vpop.permute.xlu0 %528
        %530 = vset.pattern.permute.xlu0 3
        %531 = vperm.xlu0 %530, %v204
        %v532 = vpop.permute.xlu0 %531
        %533 = vset.pattern.permute.xlu0 3
        %534 = vperm.xlu0 %533, %v205
        %v535 = vpop.permute.xlu0 %534
        %536 = vset.pattern.permute.xlu0 3
        %537 = vperm.xlu0 %536, %v206
        %v538 = vpop.permute.xlu0 %537
        %539 = vset.pattern.permute.xlu0 3
        %540 = vperm.xlu0 %539, %v207
        %v541 = vpop.permute.xlu0 %540
        %542 = vset.pattern.permute.xlu0 3
        %543 = vperm.xlu0 %542, %v208
        %v544 = vpop.permute.xlu0 %543
        %545 = vset.pattern.permute.xlu0 3
        %546 = vperm.xlu0 %545, %v209
        %v547 = vpop.permute.xlu0 %546
        %vm548 = vcmp.eq.s32.totalorder %v502, %v211
        %vm549 = vcmp.eq.s32.totalorder %v505, %v211
        %vm550 = vcmp.eq.s32.totalorder %v508, %v211
        %vm551 = vcmp.eq.s32.totalorder %v511, %v211
        %vm552 = vcmp.eq.s32.totalorder %v514, %v211
        %vm553 = vcmp.eq.s32.totalorder %v517, %v211
        %vm554 = vcmp.eq.s32.totalorder %v520, %v211
        %vm555 = vcmp.eq.s32.totalorder %v523, %v211
        %vm556 = vcmp.eq.s32.totalorder %v526, %v211
        %vm557 = vcmp.eq.s32.totalorder %v529, %v211
        %vm558 = vcmp.eq.s32.totalorder %v532, %v211
        %vm559 = vcmp.eq.s32.totalorder %v535, %v211
        %vm560 = vcmp.eq.s32.totalorder %v538, %v211
        %vm561 = vcmp.eq.s32.totalorder %v541, %v211
        %vm562 = vcmp.eq.s32.totalorder %v544, %v211
        %vm563 = vcmp.eq.s32.totalorder %v547, %v211
        %v564 = vsel %vm548, 1, 0
        %v565 = vsel %vm549, 1, 0
        %v566 = vsel %vm550, 1, 0
        %v567 = vsel %vm551, 1, 0
        %v568 = vsel %vm552, 1, 0
        %v569 = vsel %vm553, 1, 0
        %v570 = vsel %vm554, 1, 0
        %v571 = vsel %vm555, 1, 0
        %v572 = vsel %vm556, 1, 0
        %v573 = vsel %vm557, 1, 0
        %v574 = vsel %vm558, 1, 0
        %v575 = vsel %vm559, 1, 0
        %v576 = vsel %vm560, 1, 0
        %v577 = vsel %vm561, 1, 0
        %v578 = vsel %vm562, 1, 0
        %v579 = vsel %vm563, 1, 0
        %v580 = vcvt.s32.f32 %v564
        %v581 = vcvt.s32.f32 %v565
        %v582 = vcvt.s32.f32 %v566
        %v583 = vcvt.s32.f32 %v567
        %v584 = vcvt.s32.f32 %v568
        %v585 = vcvt.s32.f32 %v569
        %v586 = vcvt.s32.f32 %v570
        %v587 = vcvt.s32.f32 %v571
        %v588 = vcvt.s32.f32 %v572
        %v589 = vcvt.s32.f32 %v573
        %v590 = vcvt.s32.f32 %v574
        %v591 = vcvt.s32.f32 %v575
        %v592 = vcvt.s32.f32 %v576
        %v593 = vcvt.s32.f32 %v577
        %v594 = vcvt.s32.f32 %v578
        %v595 = vcvt.s32.f32 %v579
        %v596 = vld [vmem:[%s191] sm:$0xff]
        %v597 = vld [vmem:[%s191 + $0x8] sm:$0xff]
        %v598 = vld [vmem:[%s191 + $0x10] sm:$0xff]
        %v599 = vld [vmem:[%s191 + $0x18] sm:$0xff]
        %v600 = vld [vmem:[%s191 + $0x20] sm:$0xff]
        %v601 = vld [vmem:[%s191 + $0x28] sm:$0xff]
        %v602 = vld [vmem:[%s191 + $0x30] sm:$0xff]
        %v603 = vld [vmem:[%s191 + $0x38] sm:$0xff]
        %v604 = vld [vmem:[%s191 + $0x40] sm:$0xff]
        %v605 = vld [vmem:[%s191 + $0x48] sm:$0xff]
        %v606 = vld [vmem:[%s191 + $0x50] sm:$0xff]
        %v607 = vld [vmem:[%s191 + $0x58] sm:$0xff]
        %v608 = vld [vmem:[%s191 + $0x60] sm:$0xff]
        %v609 = vld [vmem:[%s191 + $0x68] sm:$0xff]
        %v610 = vld [vmem:[%s191 + $0x70] sm:$0xff]
        %v611 = vld [vmem:[%s191 + $0x78] sm:$0xff]
        %628 = vrot.lane.b32.xlu0 %v388, 4
        %v629 = vpop.permute.xlu0 %628
        %630 = vrot.lane.b32.xlu0 %v389, 4
        %v631 = vpop.permute.xlu0 %630
        %632 = vrot.lane.b32.xlu0 %v390, 4
        %v633 = vpop.permute.xlu0 %632
        %634 = vrot.lane.b32.xlu0 %v391, 4
        %v635 = vpop.permute.xlu0 %634
        %636 = vrot.lane.b32.xlu0 %v392, 4
        %v637 = vpop.permute.xlu0 %636
        %638 = vrot.lane.b32.xlu0 %v393, 4
        %v639 = vpop.permute.xlu0 %638
        %640 = vrot.lane.b32.xlu0 %v394, 4
        %v641 = vpop.permute.xlu0 %640
        %642 = vrot.lane.b32.xlu0 %v395, 4
        %v643 = vpop.permute.xlu0 %642
        %644 = vrot.lane.b32.xlu0 %v396, 4
        %v645 = vpop.permute.xlu0 %644
        %646 = vrot.lane.b32.xlu0 %v397, 4
        %v647 = vpop.permute.xlu0 %646
        %648 = vrot.lane.b32.xlu0 %v398, 4
        %v649 = vpop.permute.xlu0 %648
        %650 = vrot.lane.b32.xlu0 %v399, 4
        %v651 = vpop.permute.xlu0 %650
        %652 = vrot.lane.b32.xlu0 %v400, 4
        %v653 = vpop.permute.xlu0 %652
        %654 = vrot.lane.b32.xlu0 %v401, 4
        %v655 = vpop.permute.xlu0 %654
        %656 = vrot.lane.b32.xlu0 %v402, 4
        %v657 = vpop.permute.xlu0 %656
        %658 = vrot.lane.b32.xlu0 %v403, 4
        %v659 = vpop.permute.xlu0 %658
        %692 = vrot.lane.b32.xlu0 %v484, 8
        %v693 = vpop.permute.xlu0 %692
        %694 = vrot.lane.b32.xlu0 %v485, 8
        %v695 = vpop.permute.xlu0 %694
        %696 = vrot.lane.b32.xlu0 %v486, 8
        %v697 = vpop.permute.xlu0 %696
        %698 = vrot.lane.b32.xlu0 %v487, 8
        %v699 = vpop.permute.xlu0 %698
        %700 = vrot.lane.b32.xlu0 %v488, 8
        %v701 = vpop.permute.xlu0 %700
        %702 = vrot.lane.b32.xlu0 %v489, 8
        %v703 = vpop.permute.xlu0 %702
        %704 = vrot.lane.b32.xlu0 %v490, 8
        %v705 = vpop.permute.xlu0 %704
        %706 = vrot.lane.b32.xlu0 %v491, 8
        %v707 = vpop.permute.xlu0 %706
        %708 = vrot.lane.b32.xlu0 %v492, 8
        %v709 = vpop.permute.xlu0 %708
        %710 = vrot.lane.b32.xlu0 %v493, 8
        %v711 = vpop.permute.xlu0 %710
        %712 = vrot.lane.b32.xlu0 %v494, 8
        %v713 = vpop.permute.xlu0 %712
        %714 = vrot.lane.b32.xlu0 %v495, 8
        %v715 = vpop.permute.xlu0 %714
        %716 = vrot.lane.b32.xlu0 %v496, 8
        %v717 = vpop.permute.xlu0 %716
        %718 = vrot.lane.b32.xlu0 %v497, 8
        %v719 = vpop.permute.xlu0 %718
        %720 = vrot.lane.b32.xlu0 %v498, 8
        %v721 = vpop.permute.xlu0 %720
        %722 = vrot.lane.b32.xlu0 %v499, 8
        %v723 = vpop.permute.xlu0 %722
        %756 = vrot.lane.b32.xlu0 %v580, 12
        %v757 = vpop.permute.xlu0 %756
        %758 = vrot.lane.b32.xlu0 %v581, 12
        %v759 = vpop.permute.xlu0 %758
        %760 = vrot.lane.b32.xlu0 %v582, 12
        %v761 = vpop.permute.xlu0 %760
        %762 = vrot.lane.b32.xlu0 %v583, 12
        %v763 = vpop.permute.xlu0 %762
        %764 = vrot.lane.b32.xlu0 %v584, 12
        %v765 = vpop.permute.xlu0 %764
        %766 = vrot.lane.b32.xlu0 %v585, 12
        %v767 = vpop.permute.xlu0 %766
        %768 = vrot.lane.b32.xlu0 %v586, 12
        %v769 = vpop.permute.xlu0 %768
        %770 = vrot.lane.b32.xlu0 %v587, 12
        %v771 = vpop.permute.xlu0 %770
        %772 = vrot.lane.b32.xlu0 %v588, 12
        %v773 = vpop.permute.xlu0 %772
        %774 = vrot.lane.b32.xlu0 %v589, 12
        %v775 = vpop.permute.xlu0 %774
        %776 = vrot.lane.b32.xlu0 %v590, 12
        %v777 = vpop.permute.xlu0 %776
        %778 = vrot.lane.b32.xlu0 %v591, 12
        %v779 = vpop.permute.xlu0 %778
        %780 = vrot.lane.b32.xlu0 %v592, 12
        %v781 = vpop.permute.xlu0 %780
        %782 = vrot.lane.b32.xlu0 %v593, 12
        %v783 = vpop.permute.xlu0 %782
        %784 = vrot.lane.b32.xlu0 %v594, 12
        %v785 = vpop.permute.xlu0 %784
        %786 = vrot.lane.b32.xlu0 %v595, 12
        %v787 = vpop.permute.xlu0 %786
        %820 = vrot.lane.b32.xlu0 %v596, 16
        %v821 = vpop.permute.xlu0 %820
        %822 = vrot.lane.b32.xlu0 %v597, 16
        %v823 = vpop.permute.xlu0 %822
        %824 = vrot.lane.b32.xlu0 %v598, 16
        %v825 = vpop.permute.xlu0 %824
        %826 = vrot.lane.b32.xlu0 %v599, 16
        %v827 = vpop.permute.xlu0 %826
        %828 = vrot.lane.b32.xlu0 %v600, 16
        %v829 = vpop.permute.xlu0 %828
        %830 = vrot.lane.b32.xlu0 %v601, 16
        %v831 = vpop.permute.xlu0 %830
        %832 = vrot.lane.b32.xlu0 %v602, 16
        %v833 = vpop.permute.xlu0 %832
        %834 = vrot.lane.b32.xlu0 %v603, 16
        %v835 = vpop.permute.xlu0 %834
        %836 = vrot.lane.b32.xlu0 %v604, 16
        %v837 = vpop.permute.xlu0 %836
        %838 = vrot.lane.b32.xlu0 %v605, 16
        %v839 = vpop.permute.xlu0 %838
        %840 = vrot.lane.b32.xlu0 %v606, 16
        %v841 = vpop.permute.xlu0 %840
        %842 = vrot.lane.b32.xlu0 %v607, 16
        %v843 = vpop.permute.xlu0 %842
        %844 = vrot.lane.b32.xlu0 %v608, 16
        %v845 = vpop.permute.xlu0 %844
        %846 = vrot.lane.b32.xlu0 %v609, 16
        %v847 = vpop.permute.xlu0 %846
        %848 = vrot.lane.b32.xlu0 %v610, 16
        %v849 = vpop.permute.xlu0 %848
        %850 = vrot.lane.b32.xlu0 %v611, 16
        %v851 = vpop.permute.xlu0 %850
        %vm868 = vcmask 31744
        %v869 = vsel %vm868, %v292, %v629
        %v870 = vsel %vm868, %v293, %v631
        %v871 = vsel %vm868, %v294, %v633
        %v872 = vsel %vm868, %v295, %v635
        %v873 = vsel %vm868, %v296, %v637
        %v874 = vsel %vm868, %v297, %v639
        %v875 = vsel %vm868, %v298, %v641
        %v876 = vsel %vm868, %v299, %v643
        %v877 = vsel %vm868, %v300, %v645
        %v878 = vsel %vm868, %v301, %v647
        %v879 = vsel %vm868, %v302, %v649
        %v880 = vsel %vm868, %v303, %v651
        %v881 = vsel %vm868, %v304, %v653
        %v882 = vsel %vm868, %v305, %v655
        %v883 = vsel %vm868, %v306, %v657
        %v884 = vsel %vm868, %v307, %v659
        %vm885 = vcmask 64512
        %v886 = vsel %vm885, %v869, %v693
        %v887 = vsel %vm885, %v870, %v695
        %v888 = vsel %vm885, %v871, %v697
        %v889 = vsel %vm885, %v872, %v699
        %v890 = vsel %vm885, %v873, %v701
        %v891 = vsel %vm885, %v874, %v703
        %v892 = vsel %vm885, %v875, %v705
        %v893 = vsel %vm885, %v876, %v707
        %v894 = vsel %vm885, %v877, %v709
        %v895 = vsel %vm885, %v878, %v711
        %v896 = vsel %vm885, %v879, %v713
        %v897 = vsel %vm885, %v880, %v715
        %v898 = vsel %vm885, %v881, %v717
        %v899 = vsel %vm885, %v882, %v719
        %v900 = vsel %vm885, %v883, %v721
        %v901 = vsel %vm885, %v884, %v723
        %vm902 = vcmask 97280
        %v903 = vsel %vm902, %v886, %v757
        %v904 = vsel %vm902, %v887, %v759
        %v905 = vsel %vm902, %v888, %v761
        %v906 = vsel %vm902, %v889, %v763
        %v907 = vsel %vm902, %v890, %v765
        %v908 = vsel %vm902, %v891, %v767
        %v909 = vsel %vm902, %v892, %v769
        %v910 = vsel %vm902, %v893, %v771
        %v911 = vsel %vm902, %v894, %v773
        %v912 = vsel %vm902, %v895, %v775
        %v913 = vsel %vm902, %v896, %v777
        %v914 = vsel %vm902, %v897, %v779
        %v915 = vsel %vm902, %v898, %v781
        %v916 = vsel %vm902, %v899, %v783
        %v917 = vsel %vm902, %v900, %v785
        %v918 = vsel %vm902, %v901, %v787
        %vm919 = vcmask 130048
        %v920 = vsel %vm919, %v903, %v821
        %v921 = vsel %vm919, %v904, %v823
        %v922 = vsel %vm919, %v905, %v825
        %v923 = vsel %vm919, %v906, %v827
        %v924 = vsel %vm919, %v907, %v829
        %v925 = vsel %vm919, %v908, %v831
        %v926 = vsel %vm919, %v909, %v833
        %v927 = vsel %vm919, %v910, %v835
        %v928 = vsel %vm919, %v911, %v837
        %v929 = vsel %vm919, %v912, %v839
        %v930 = vsel %vm919, %v913, %v841
        %v931 = vsel %vm919, %v914, %v843
        %v932 = vsel %vm919, %v915, %v845
        %v933 = vsel %vm919, %v916, %v847
        %v934 = vsel %vm919, %v917, %v849
        %v935 = vsel %vm919, %v918, %v851
        %vm936 = vcmask 162816
        %v937 = vsel %vm936, %v920, 1.0
        %v938 = vsel %vm936, %v921, 1.0
        %v939 = vsel %vm936, %v922, 1.0
        %v940 = vsel %vm936, %v923, 1.0
        %v941 = vsel %vm936, %v924, 1.0
        %v942 = vsel %vm936, %v925, 1.0
        %v943 = vsel %vm936, %v926, 1.0
        %v944 = vsel %vm936, %v927, 1.0
        %v945 = vsel %vm936, %v928, 1.0
        %v946 = vsel %vm936, %v929, 1.0
        %v947 = vsel %vm936, %v930, 1.0
        %v948 = vsel %vm936, %v931, 1.0
        %v949 = vsel %vm936, %v932, 1.0
        %v950 = vsel %vm936, %v933, 1.0
        %v951 = vsel %vm936, %v934, 1.0
        %v952 = vsel %vm936, %v935, 1.0
        %v953 = vld [vmem:[%s2] sm:$0xff]
        %v954 = vld [vmem:[%s2 + $0x8] sm:$0xff]
        %v955 = vld [vmem:[%s2 + $0x10] sm:$0xff]
        %v956 = vld [vmem:[%s2 + $0x18] sm:$0xff]
        %v957 = vld [vmem:[%s2 + $0x20] sm:$0x1f]
        %v958 = vld [vmem:[%s2 + $0x28] sm:$0x1f]
        %vm959 = vcmask 171008
        %v961 = vsel %vm959, %v937, 0
        %v964 = vsel %vm959, %v938, 0
        %v967 = vsel %vm959, %v939, 0
        %v970 = vsel %vm959, %v940, 0
        %v973 = vsel %vm959, %v941, 0
        %v976 = vsel %vm959, %v942, 0
        %v979 = vsel %vm959, %v943, 0
        %v982 = vsel %vm959, %v944, 0
        %v985 = vsel %vm959, %v945, 0
        %v988 = vsel %vm959, %v946, 0
        %v991 = vsel %vm959, %v947, 0
        %v994 = vsel %vm959, %v948, 0
        %v997 = vsel %vm959, %v949, 0
        %v1000 = vsel %vm959, %v950, 0
        %v1003 = vsel %vm959, %v951, 0
        %v1006 = vsel %vm959, %v952, 0
        %vm1008 = vcmask 1044480
        %v1010 = vsel %vm1008, %v957, 0
        %v1013 = vsel %vm1008, %v958, 0
        %1015 = vmatprep.subr.mxu0 %v954
        %1016 = vmatpush1.msra.mxu0 %v953
        %1017 = vmatprep.subr.mxu0 %v956
        %1018 = vmatpush1.msra.mxu0 %v955
        %1019 = vmatprep.subr.mxu0 %v1013
        %1020 = vmatpush1.msra.mxu0 %v1010
        %1021 = vmatprep.subr.mxu0 0.0
        %1022 = vmatpush1.msra.mxu0 0.0
        %1023 = vmatprep.subr.mxu0 0.0
        %1024 = vmatpush1.msra.mxu0 0.0
        %1025 = vmatprep.subr.mxu0 0.0
        %1026 = vmatpush1.msra.mxu0 0.0
        %1027 = vmatprep.subr.mxu0 0.0
        %1028 = vmatpush1.msra.mxu0 0.0
        %1029 = vmatprep.subr.mxu0 0.0
        %1030 = vmatpush1.msra.mxu0 0.0
        %1031 = vmatprep.subr.mxu0 0.0
        %1032 = vmatpush1.msra.mxu0 0.0
        %1033 = vmatprep.subr.mxu0 0.0
        %1034 = vmatpush1.msra.mxu0 0.0
        %1035 = vmatprep.subr.mxu0 0.0
        %1036 = vmatpush1.msra.mxu0 0.0
        %1037 = vmatprep.subr.mxu0 0.0
        %1038 = vmatpush1.msra.mxu0 0.0
        %1039 = vmatprep.subr.mxu0 0.0
        %1040 = vmatpush1.msra.mxu0 0.0
        %1041 = vmatprep.subr.mxu0 0.0
        %1042 = vmatpush1.msra.mxu0 0.0
        %1043 = vmatprep.subr.mxu0 0.0
        %1044 = vmatpush1.msra.mxu0 0.0
        %1045 = vmatprep.subr.mxu0 0.0
        %1046 = vmatpush1.msra.mxu0 0.0
        %1047 = vmatprep.subr.mxu0 0.0
        %1048 = vmatpush1.msra.mxu0 0.0
        %1049 = vmatprep.subr.mxu0 0.0
        %1050 = vmatpush1.msra.mxu0 0.0
        %1051 = vmatprep.subr.mxu0 0.0
        %1052 = vmatpush1.msra.mxu0 0.0
        %1053 = vmatprep.subr.mxu0 0.0
        %1054 = vmatpush1.msra.mxu0 0.0
        %1055 = vmatprep.subr.mxu0 0.0
        %1056 = vmatpush1.msra.mxu0 0.0
        %1057 = vmatprep.subr.mxu0 0.0
        %1058 = vmatpush1.msra.mxu0 0.0
        %1059 = vmatprep.subr.mxu0 0.0
        %1060 = vmatpush1.msra.mxu0 0.0
        %1061 = vmatprep.subr.mxu0 0.0
        %1062 = vmatpush1.msra.mxu0 0.0
        %1063 = vmatprep.subr.mxu0 0.0
        %1064 = vmatpush1.msra.mxu0 0.0
        %1065 = vmatprep.subr.mxu0 0.0
        %1066 = vmatpush1.msra.mxu0 0.0
        %1067 = vmatprep.subr.mxu0 0.0
        %1068 = vmatpush1.msra.mxu0 0.0
        %1069 = vmatprep.subr.mxu0 0.0
        %1070 = vmatpush1.msra.mxu0 0.0
        %1071 = vmatprep.subr.mxu0 0.0
        %1072 = vmatpush1.msra.mxu0 0.0
        %1073 = vmatprep.subr.mxu0 0.0
        %1074 = vmatpush1.msra.mxu0 0.0
        %1075 = vmatprep.subr.mxu0 0.0
        %1076 = vmatpush1.msra.mxu0 0.0
        %1077 = vmatprep.subr.mxu0 0.0
        %1078 = vmatpush1.msra.mxu0 0.0
        %1079 = vmatprep.mubr.f32.mxu0 0.0
        %1080 = vmatmul.mubr.f32.gmra.mrb[0].mxu0 %v961
        %v1081 = vpop.f32.mrb[0].mxu0
        %v1082 = vadd.f32 0.0, %v1081
        %v1083 = vpop.f32.mrb[0].mxu0
        %v1084 = vadd.f32 0.0, %v1083
        %1085 = vmatprep.mubr.f32.mxu0 0.0
        %1086 = vmatmul.mubr.f32.gmra.mrb[0].mxu0 %v964
        %v1087 = vpop.f32.mrb[0].mxu0
        %v1088 = vadd.f32 0.0, %v1087
        %v1089 = vpop.f32.mrb[0].mxu0
        %v1090 = vadd.f32 0.0, %v1089
        %1091 = vmatprep.mubr.f32.mxu0 0.0
        %1092 = vmatmul.mubr.f32.gmra.mrb[0].mxu0 %v967
        %v1093 = vpop.f32.mrb[0].mxu0
        %v1094 = vadd.f32 0.0, %v1093
        %v1095 = vpop.f32.mrb[0].mxu0
        %v1096 = vadd.f32 0.0, %v1095
        %1097 = vmatprep.mubr.f32.mxu0 0.0
        %1098 = vmatmul.mubr.f32.gmra.mrb[0].mxu0 %v970
        %v1099 = vpop.f32.mrb[0].mxu0
        %v1100 = vadd.f32 0.0, %v1099
        %v1101 = vpop.f32.mrb[0].mxu0
        %v1102 = vadd.f32 0.0, %v1101
        %1103 = vmatprep.mubr.f32.mxu0 0.0
        %1104 = vmatmul.mubr.f32.gmra.mrb[0].mxu0 %v973
        %v1105 = vpop.f32.mrb[0].mxu0
        %v1106 = vadd.f32 0.0, %v1105
        %v1107 = vpop.f32.mrb[0].mxu0
        %v1108 = vadd.f32 0.0, %v1107
        %1109 = vmatprep.mubr.f32.mxu0 0.0
        %1110 = vmatmul.mubr.f32.gmra.mrb[0].mxu0 %v976
        %v1111 = vpop.f32.mrb[0].mxu0
        %v1112 = vadd.f32 0.0, %v1111
        %v1113 = vpop.f32.mrb[0].mxu0
        %v1114 = vadd.f32 0.0, %v1113
        %1115 = vmatprep.mubr.f32.mxu0 0.0
        %1116 = vmatmul.mubr.f32.gmra.mrb[0].mxu0 %v979
        %v1117 = vpop.f32.mrb[0].mxu0
        %v1118 = vadd.f32 0.0, %v1117
        %v1119 = vpop.f32.mrb[0].mxu0
        %v1120 = vadd.f32 0.0, %v1119
        %1121 = vmatprep.mubr.f32.mxu0 0.0
        %1122 = vmatmul.mubr.f32.gmra.mrb[0].mxu0 %v982
        %v1123 = vpop.f32.mrb[0].mxu0
        %v1124 = vadd.f32 0.0, %v1123
        %v1125 = vpop.f32.mrb[0].mxu0
        %v1126 = vadd.f32 0.0, %v1125
        %1127 = vmatprep.mubr.f32.mxu0 0.0
        %1128 = vmatmul.mubr.f32.gmra.mrb[0].mxu0 %v985
        %v1129 = vpop.f32.mrb[0].mxu0
        %v1130 = vadd.f32 0.0, %v1129
        %v1131 = vpop.f32.mrb[0].mxu0
        %v1132 = vadd.f32 0.0, %v1131
        %1133 = vmatprep.mubr.f32.mxu0 0.0
        %1134 = vmatmul.mubr.f32.gmra.mrb[0].mxu0 %v988
        %v1135 = vpop.f32.mrb[0].mxu0
        %v1136 = vadd.f32 0.0, %v1135
        %v1137 = vpop.f32.mrb[0].mxu0
        %v1138 = vadd.f32 0.0, %v1137
        %1139 = vmatprep.mubr.f32.mxu0 0.0
        %1140 = vmatmul.mubr.f32.gmra.mrb[0].mxu0 %v991
        %v1141 = vpop.f32.mrb[0].mxu0
        %v1142 = vadd.f32 0.0, %v1141
        %v1143 = vpop.f32.mrb[0].mxu0
        %v1144 = vadd.f32 0.0, %v1143
        %1145 = vmatprep.mubr.f32.mxu0 0.0
        %1146 = vmatmul.mubr.f32.gmra.mrb[0].mxu0 %v994
        %v1147 = vpop.f32.mrb[0].mxu0
        %v1148 = vadd.f32 0.0, %v1147
        %v1149 = vpop.f32.mrb[0].mxu0
        %v1150 = vadd.f32 0.0, %v1149
        %1151 = vmatprep.mubr.f32.mxu0 0.0
        %1152 = vmatmul.mubr.f32.gmra.mrb[0].mxu0 %v997
        %v1153 = vpop.f32.mrb[0].mxu0
        %v1154 = vadd.f32 0.0, %v1153
        %v1155 = vpop.f32.mrb[0].mxu0
        %v1156 = vadd.f32 0.0, %v1155
        %1157 = vmatprep.mubr.f32.mxu0 0.0
        %1158 = vmatmul.mubr.f32.gmra.mrb[0].mxu0 %v1000
        %v1159 = vpop.f32.mrb[0].mxu0
        %v1160 = vadd.f32 0.0, %v1159
        %v1161 = vpop.f32.mrb[0].mxu0
        %v1162 = vadd.f32 0.0, %v1161
        %1163 = vmatprep.mubr.f32.mxu0 0.0
        %1164 = vmatmul.mubr.f32.gmra.mrb[0].mxu0 %v1003
        %v1165 = vpop.f32.mrb[0].mxu0
        %v1166 = vadd.f32 0.0, %v1165
        %v1167 = vpop.f32.mrb[0].mxu0
        %v1168 = vadd.f32 0.0, %v1167
        %1169 = vmatprep.mubr.f32.mxu0 0.0
        %1170 = vmatmul.mubr.f32.gmra.mrb[0].mxu0 %v1006
        %v1171 = vpop.f32.mrb[0].mxu0
        %v1172 = vadd.f32 0.0, %v1171
        %v1173 = vpop.f32.mrb[0].mxu0
        %v1174 = vadd.f32 0.0, %v1173
        %1175 = vdwg.mxu0
        %1176 = vst [vmem:[%s180] sm:$0xff] %v1082
        %1177 = vst [vmem:[%s180 + $0x8] sm:$0xff] %v1084
        %1178 = vst [vmem:[%s180 + $0x10] sm:$0xff] %v1088
        %1179 = vst [vmem:[%s180 + $0x18] sm:$0xff] %v1090
        %1180 = vst [vmem:[%s180 + $0x20] sm:$0xff] %v1094
        %1181 = vst [vmem:[%s180 + $0x28] sm:$0xff] %v1096
        %1182 = vst [vmem:[%s180 + $0x30] sm:$0xff] %v1100
        %1183 = vst [vmem:[%s180 + $0x38] sm:$0xff] %v1102
        %1184 = vst [vmem:[%s180 + $0x40] sm:$0xff] %v1106
        %1185 = vst [vmem:[%s180 + $0x48] sm:$0xff] %v1108
        %1186 = vst [vmem:[%s180 + $0x50] sm:$0xff] %v1112
        %1187 = vst [vmem:[%s180 + $0x58] sm:$0xff] %v1114
        %1188 = vst [vmem:[%s180 + $0x60] sm:$0xff] %v1118
        %1189 = vst [vmem:[%s180 + $0x68] sm:$0xff] %v1120
        %1190 = vst [vmem:[%s180 + $0x70] sm:$0xff] %v1124
        %1191 = vst [vmem:[%s180 + $0x78] sm:$0xff] %v1126
        %1192 = vst [vmem:[%s180 + $0x80] sm:$0xff] %v1130
        %1193 = vst [vmem:[%s180 + $0x88] sm:$0xff] %v1132
        %1194 = vst [vmem:[%s180 + $0x90] sm:$0xff] %v1136
        %1195 = vst [vmem:[%s180 + $0x98] sm:$0xff] %v1138
        %1196 = vst [vmem:[%s180 + $0xa0] sm:$0xff] %v1142
        %1197 = vst [vmem:[%s180 + $0xa8] sm:$0xff] %v1144
        %1198 = vst [vmem:[%s180 + $0xb0] sm:$0xff] %v1148
        %1199 = vst [vmem:[%s180 + $0xb8] sm:$0xff] %v1150
        %1200 = vst [vmem:[%s180 + $0xc0] sm:$0xff] %v1154
        %1201 = vst [vmem:[%s180 + $0xc8] sm:$0xff] %v1156
        %1202 = vst [vmem:[%s180 + $0xd0] sm:$0xff] %v1160
        %1203 = vst [vmem:[%s180 + $0xd8] sm:$0xff] %v1162
        %1204 = vst [vmem:[%s180 + $0xe0] sm:$0xff] %v1166
        %1205 = vst [vmem:[%s180 + $0xe8] sm:$0xff] %v1168
        %1206 = vst [vmem:[%s180 + $0xf0] sm:$0xff] %v1172
        %1207 = vst [vmem:[%s180 + $0xf8] sm:$0xff] %v1174
        %s1208 = sand.u32 %s98, 1
        %s1209 = scalar_lea.sflag [#allocation3], %s1208
        %s1210 = sand.u32 %s98, 1
        %s1211 = smul.addr %s1210, 256
        %s1212 = scalar_lea.vmem [#allocation2], %s1211
        // Predicated region
        $region33: #{tpu_custom_call.1} parent=31 // pred_check
          %p1213 = pneg %p108
        $region34: #{tpu_custom_call.1} parent=31 // pred_check_branch
          %1215 = sbr.rel (%p1213) target = $region36
        $region35: #{tpu_custom_call.1} parent=31 // pred_region
          %s1216 = smul.u32 16, %s17
          %s1218 = ssub.s32 4096, 4096
          %1219 = vsyncadd %s1209, %s1218
          %s1220 = smul.addr %s1216, 2
          %s1221 = smul.addr %s1220, 128
          %s1222 = scalar_lea.hbm %s3, %s1221
          %s1223 = sshll.u32 %s1212, 4
          %s1224 = int_to_ptr.vmem [resolvable:$true] %s1223
          %1229 = dma.vmem_to_hbm [thread:$0]  %s1224, 4096, %s1222, %s1209, 256, 256, 16
        $region36: #{tpu_custom_call.1} parent=31 // pred_fallthru
          _
      $region32: #{tpu_custom_call.1} parent=5 // pred_fallthru
        _
      %p1230 = scmp.le.s32.totalorder 2, %s12
      // Predicated region
      $region37: #{tpu_custom_call.1} parent=5 // pred_check
        %p1231 = pneg %p1230
      $region38: #{tpu_custom_call.1} parent=5 // pred_check_branch
        %1233 = sbr.rel (%p1231) target = $region40
      $region39: #{tpu_custom_call.1} parent=5 // pred_region
        %s1234 = ssub.s32 %s12, 2
        // Predicated region
        $region41: #{tpu_custom_call.1} parent=39 // pred_check
          %p1235 = pneg %p114
        $region42: #{tpu_custom_call.1} parent=39 // pred_check_branch
          %1237 = sbr.rel (%p1235) target = $region44
        $region43: #{tpu_custom_call.1} parent=39 // pred_region
          %s1238 = sand.u32 %s99, 1
          %s1239 = scalar_lea.sflag [#allocation3], %s1238
          %s1240 = sand.u32 %s99, 1
          %s1241 = smul.addr %s1240, 256
          %s1242 = scalar_lea.vmem [#allocation2], %s1241
          %1243 = dma.done %s1239, 4096
        $region44: #{tpu_custom_call.1} parent=39 // pred_fallthru
          _
      $region40: #{tpu_custom_call.1} parent=5 // pred_fallthru
        _
    $region6: #{tpu_custom_call.1} parent=1 // loop_footer
      %s16 = sadd.s32 1, %s12
    $region7: #{tpu_custom_call.1} parent=1 // loop_footer_branch
      %11 = sbr.rel target = $region3
    $region8: #{tpu_custom_call.1} parent=1 // loop_exit
      _
    %1244 = vsyncpa [#allocation3], 1
    %s1245 = scalar_lea.sflag [#allocation3], 1
    %1246 = vsyncpa %s1245, 1

</llo_original>
